<compile_context>
chip_gen: v7x
topology: tpu7x:2x2x1
jax: 0.10.0
libtpu: 0.0.40
codegen_flags: <defaults>
</compile_context>

<pallas_src>
import numpy as np

import jax
import jax.numpy as jnp
from jax.experimental import pallas as pl
from jax.experimental.pallas import tpu as pltpu


_SMALL_BATCH_XLA_THRESHOLD = 2048


def _linear_kernel_bo(x_ref, w_ref, b_ref, o_ref):
    # x: (TB, IN), w: (OUT, IN) (PyTorch layout), b: (1, OUT), o: (TB, OUT).
    x = x_ref[...]
    w = w_ref[...]
    if x.dtype != w.dtype:  # trace-time: harmonize dtypes for the MXU dot
        ct = jnp.promote_types(x.dtype, w.dtype)
        x = x.astype(ct)
        w = w.astype(ct)
    acc = jax.lax.dot_general(
        x, w,
        dimension_numbers=(((1,), (1,)), ((), ())),
        preferred_element_type=jnp.float32,
    )
    o_ref[...] = (acc + b_ref[...]).astype(o_ref.dtype)


def _linear_kernel_ob(x_ref, w_ref, b_ref, o_ref):
    # Lane-dense output: o = w @ x.T.
    # x: (TB, IN), w: (OUT, IN), b: (OUT, 1), o: (OUT, TB) -> unmasked stores.
    x = x_ref[...]
    w = w_ref[...]
    if x.dtype != w.dtype:
        ct = jnp.promote_types(x.dtype, w.dtype)
        x = x.astype(ct)
        w = w.astype(ct)
    acc = jax.lax.dot_general(
        w, x,
        dimension_numbers=(((1,), (1,)), ((), ())),
        preferred_element_type=jnp.float32,
    )
    o_ref[...] = (acc + b_ref[...]).astype(o_ref.dtype)


def _vmem_capacity_bytes():
    try:
        return int(pltpu.get_tpu_info().vmem_capacity_bytes)
    except Exception:
        return 64 << 20  # conservative: v7x per-TensorCore VMEM


def _round_up(v, m):
    return -(-v // m) * m


def _padded_2d_bytes(shape, dtype):
    # VMEM tile padding estimate: sublanes -> multiple of 8, lanes -> 128.
    r = _round_up(int(shape[-2]), 8)
    c = _round_up(int(shape[-1]), 128)
    return r * c * np.dtype(dtype).itemsize


def _default_batch_tile(x_dtype, out_dtype, out_layout):
    vmem = _vmem_capacity_bytes()
    budget = vmem // 2  # keep ~half of physical VMEM as headroom
    # Double-buffered, lane-padded per-batch-row cost of x (+ output) blocks.
    per_row = 2 * 128 * np.dtype(x_dtype).itemsize
    if out_layout == "bo":
        per_row += 2 * 128 * np.dtype(out_dtype).itemsize  # (TB, 2) pads lanes 2->128
    else:
        per_row += 2 * 8 * np.dtype(out_dtype).itemsize    # (2, TB) pads sublanes 2->8
    tile = budget // per_row
    tile = max(1024, (tile // 1024) * 1024)
    return int(min(tile, 32768))


def binary_nn_forward(x, weight, bias, *, batch_tile=None, out_layout="bo",
                      small_batch_xla=False):
    """Forward of BinaryNN: nn.Linear(10, 2).

    x:      (B, 10)  float32 or bfloat16 (caller-chosen; no wrapper casts)
    weight: (2, 10)  PyTorch nn.Linear convention, passed unmodified
    bias:   (2,)
    out_layout:
      "bo" (default): returns (B, 2) -- matches nn.Linear output layout.
      "ob": returns (2, B) lane-dense, for batch-last consumers (avoids
            masked output stores / 64x output-block padding in the kernel).
    """
    B, IN = x.shape
    OUT, IN2 = weight.shape
    assert IN == IN2 and bias.shape == (OUT,)
    assert out_layout in ("bo", "ob")

    out_dtype = jnp.promote_types(x.dtype, weight.dtype)

    if small_batch_xla and B <= _SMALL_BATCH_XLA_THRESHOLD:
        # Tiny batches: custom-call dispatch + DMA setup dominate; let XLA
        # fuse the dot into the surrounding graph instead.
        y = jax.lax.dot_general(
            x, weight, dimension_numbers=(((1,), (1,)), ((), ())),
            preferred_element_type=jnp.float32,
        ).astype(out_dtype) + bias.astype(out_dtype)
        return y if out_layout == "bo" else y.T

    if batch_tile is None:
        batch_tile = _default_batch_tile(x.dtype, out_dtype, out_layout)

    vmem_cap = _vmem_capacity_bytes()
    out_bytes = B * OUT * np.dtype(out_dtype).itemsize
    cost = pl.CostEstimate(
        flops=2 * B * IN * OUT,
        transcendentals=0,
        bytes_accessed=int(x.size * x.dtype.itemsize
                           + weight.size * weight.dtype.itemsize
                           + bias.size * bias.dtype.itemsize
                           + out_bytes),
    )

    if out_layout == "bo":
        kernel = _linear_kernel_bo
        bias2 = bias.reshape(1, OUT)   # 8-byte reshape; clean 2-D broadcast in-kernel
        out_shape = jax.ShapeDtypeStruct((B, OUT), out_dtype)
    else:
        kernel = _linear_kernel_ob
        bias2 = bias.reshape(OUT, 1)
        out_shape = jax.ShapeDtypeStruct((OUT, B), out_dtype)

    if B <= batch_tile:
        # Gridless single-block call: no pipeline prologue/epilogue and no
        # double-buffered VMEM allocations.
        needed = (_padded_2d_bytes((B, IN), x.dtype)
                  + _padded_2d_bytes(out_shape.shape, out_dtype)
                  + _padded_2d_bytes((OUT, IN), weight.dtype)
                  + _padded_2d_bytes(bias2.shape, bias2.dtype))
        vmem_limit = int(min(vmem_cap * 7 // 8, max(32 << 20, needed + (16 << 20))))
        return pl.pallas_call(
            kernel,
            out_shape=out_shape,
            in_specs=[
                pl.BlockSpec(memory_space=pltpu.MemorySpace.VMEM),
                pl.BlockSpec(memory_space=pltpu.MemorySpace.VMEM),
                pl.BlockSpec(memory_space=pltpu.MemorySpace.VMEM),
            ],
            out_specs=pl.BlockSpec(memory_space=pltpu.MemorySpace.VMEM),
            compiler_params=pltpu.CompilerParams(vmem_limit_bytes=vmem_limit),
            cost_estimate=cost,
        )(x, weight, bias2)

    # Grid path: tile the batch axis; weight/bias stay VMEM-resident
    # (constant index_map).  Since B > batch_tile here, nb >= 2, so the
    # "parallel" axis keeps both v7x TensorCores busy.
    if out_layout == "ob":
        assert batch_tile % 128 == 0, "lane-dense output needs a 128-aligned batch tile"
    else:
        assert batch_tile % 8 == 0, "batch tile must be a multiple of 8 sublanes"
    nb = pl.cdiv(B, batch_tile)

    x_spec = pl.BlockSpec((batch_tile, IN), lambda i: (i, 0))
    w_spec = pl.BlockSpec((OUT, IN), lambda i: (0, 0))
    if out_layout == "bo":
        b_spec = pl.BlockSpec((1, OUT), lambda i: (0, 0))
        o_spec = pl.BlockSpec((batch_tile, OUT), lambda i: (i, 0))
        out_block_shape = (batch_tile, OUT)
    else:
        b_spec = pl.BlockSpec((OUT, 1), lambda i: (0, 0))
        o_spec = pl.BlockSpec((OUT, batch_tile), lambda i: (0, i))
        out_block_shape = (OUT, batch_tile)

    needed = (2 * _padded_2d_bytes((batch_tile, IN), x.dtype)
              + 2 * _padded_2d_bytes(out_block_shape, out_dtype)
              + 2 * _padded_2d_bytes((OUT, IN), weight.dtype)
              + 2 * _padded_2d_bytes(bias2.shape, bias2.dtype))
    vmem_limit = int(min(vmem_cap * 7 // 8, max(32 << 20, needed + (16 << 20))))

    return pl.pallas_call(
        kernel,
        out_shape=out_shape,
        grid=(nb,),
        in_specs=[x_spec, w_spec, b_spec],
        out_specs=o_spec,
        compiler_params=pltpu.CompilerParams(
            dimension_semantics=("parallel",),
            vmem_limit_bytes=vmem_limit,
        ),
        cost_estimate=cost,
    )(x, weight, bias2)


if __name__ == "__main__":
    key = jax.random.PRNGKey(0)
    kx, kw, kb, kx2, kx3 = jax.random.split(key, 5)

    IN, OUT = 10, 2
    bound = 1.0 / (IN ** 0.5)

    # Deterministic synthetic parameters (shapes from nn.Linear(10, 2)).
    weight = jax.random.uniform(kw, (OUT, IN), jnp.float32, -bound, bound)
    bias = jax.random.uniform(kb, (OUT,), jnp.float32, -bound, bound)

    def ref(xv):
        return xv.astype(jnp.float32) @ weight.T + bias

    # 1) Small batch -> gridless single-block Pallas path (nn.Linear layout).
    x_small = jax.random.normal(kx, (8, IN), jnp.float32)
    out_small = jax.block_until_ready(binary_nn_forward(x_small, weight, bias))
    assert out_small.shape == (8, OUT)
    assert jnp.allclose(out_small, ref(x_small), atol=1e-5, rtol=1e-5)

    # 2) Lane-dense (OUT, B) output variant (for batch-last consumers).
    out_ob = jax.block_until_ready(
        binary_nn_forward(x_small, weight, bias, out_layout="ob"))
    assert out_ob.shape == (OUT, 8)
    assert jnp.allclose(out_ob.T, ref(x_small), atol=1e-5, rtol=1e-5)

    # 3) Grid path with B not a multiple of the tile (remainder-block check),
    #    both layouts.  batch_tile is forced small here only to exercise the
    #    grid at test scale; the production default is VMEM-derived (16K-32K).
    x_big = jax.random.normal(kx2, (1030, IN), jnp.float32)
    out_big = jax.block_until_ready(
        binary_nn_forward(x_big, weight, bias, batch_tile=512))
    assert out_big.shape == (1030, OUT)
    assert jnp.allclose(out_big, ref(x_big), atol=1e-5, rtol=1e-5)

    out_big_ob = jax.block_until_ready(
        binary_nn_forward(x_big, weight, bias, batch_tile=512, out_layout="ob"))
    assert out_big_ob.shape == (OUT, 1030)
    assert jnp.allclose(out_big_ob.T, ref(x_big), atol=1e-5, rtol=1e-5)

    # 4) bf16 x accepted without wrapper-side casting (f32 MXU accumulate).
    x_bf16 = jax.random.normal(kx3, (16, IN), jnp.float32).astype(jnp.bfloat16)
    out_bf16 = jax.block_until_ready(binary_nn_forward(x_bf16, weight, bias))
    assert out_bf16.dtype == jnp.float32
    assert jnp.allclose(out_bf16, ref(x_bf16), atol=2e-2, rtol=2e-2)

    # 5) Optional XLA bypass for tiny batches (no Pallas custom call).
    out_xla = jax.block_until_ready(
        binary_nn_forward(x_small, weight, bias, small_batch_xla=True))
    assert jnp.allclose(out_xla, ref(x_small), atol=1e-5, rtol=1e-5)

    print("KERNEL_OK")
</pallas_src>

<mosaic_0001>
module attributes {stable_mosaic.version = 11 : i64} {
  func.func @_linear_kernel_bo(%arg0: memref<8x10xf32, #tpu.memory_space<vmem>>, %arg1: memref<2x10xf32, #tpu.memory_space<vmem>>, %arg2: memref<1x2xf32, #tpu.memory_space<vmem>>, %arg3: memref<8x2xf32, #tpu.memory_space<vmem>>) attributes {dimension_semantics = [], scalar_prefetch = 0 : i64, scratch_operands = 0 : i64, tpu.core_type = #tpu.core_type<tc>} {
    %c0 = arith.constant 0 : index
    %c0_0 = arith.constant 0 : index
    %0 = vector.load %arg0[%c0, %c0_0] : memref<8x10xf32, #tpu.memory_space<vmem>>, vector<8x10xf32>
    %c0_1 = arith.constant 0 : index
    %c0_2 = arith.constant 0 : index
    %1 = vector.load %arg1[%c0_1, %c0_2] : memref<2x10xf32, #tpu.memory_space<vmem>>, vector<2x10xf32>
    %cst = arith.constant dense<0.000000e+00> : vector<8x2xf32>
    %2 = tpu.matmul %0, %1, %cst {dimension_numbers = #tpu.dot_dimension_numbers<[1], [1], [0], [0], [0, 0, 1, 0], [], []>} : vector<8x10xf32>, vector<2x10xf32>, vector<8x2xf32> -> vector<8x2xf32>
    %c0_3 = arith.constant 0 : index
    %c0_4 = arith.constant 0 : index
    %3 = vector.load %arg2[%c0_3, %c0_4] : memref<1x2xf32, #tpu.memory_space<vmem>>, vector<1x2xf32>
    %4 = vector.broadcast %3 : vector<1x2xf32> to vector<8x2xf32>
    %5 = arith.addf %2, %4 : vector<8x2xf32>
    %c0_5 = arith.constant 0 : index
    %c0_6 = arith.constant 0 : index
    %6 = vector.load %arg3[%c0_5, %c0_6] : memref<8x2xf32, #tpu.memory_space<vmem>>, vector<8x2xf32>
    tpu.vector_store %arg3[%c0_5, %c0_6], %5 {strides = array<i32>} : memref<8x2xf32, #tpu.memory_space<vmem>>, vector<8x2xf32>,
    return
  }
}

</mosaic_0001>

<llo_original>
// kernel: tpu_custom_call.1
$region0: #{tpu_custom_call.1}
  #allocation0 [shape = 'u32[]', space=smem, size = 0x4, offset = 0x4, fixed_abs, tag = 'smem constant byte address 0x4 - core index']
  #allocation1 [shape = 'u32[144,128]{1,0:T(1,128)}', space=vmem, size = 0x12000, scoped, tag = 'internal scratch']
  %s0 = inlined_call_operand.hbm [shape: f32[8,10], index: 0, kind: input, shape index: {}]
  %s1 = inlined_call_operand.vmem [shape: f32[2,10], index: 1, kind: input, shape index: {}]
  %s2 = inlined_call_operand.vmem [shape: f32[1,2], index: 2, kind: input, shape index: {}]
  %s3 = inlined_call_operand.vmem [shape: f32[8,2], index: 3, kind: output, shape index: {}]
  %s4 = sld [smem:[#allocation0]]
  $region26: #{tpu_custom_call.1} parent=0
    _
  %s6 = ssub.s32 1, %s4
  %s7 = scalar_select 0, %s6, %s4
  $region1: #{tpu_custom_call.1} parent=0
    #allocation2 [shape = 'u8[4096]{0}', space=vmem, size = 0x1000, scoped, tag = 'input window, operand 0, single buffered']
    #allocation3 [shape = 's32[1]{0}', space=sflag, size = 0x4, scoped, tag = 'scoped memory for tpu_custom_call.1']
    %8 = vsyncpa [#allocation3], 0
    // Predicated region
    $region2: #{tpu_custom_call.1} parent=1 // pred_check
      _
    $region3: #{tpu_custom_call.1} parent=1 // pred_check_branch
      %10 = sbr.rel (0) target = $region5
    $region4: #{tpu_custom_call.1} parent=1 // pred_region
      %s12 = ssub.s32 128, 128
      %13 = vsyncadd [#allocation3], %s12
      %s15 = sshll.u32 [#allocation2], 4
      %s16 = int_to_ptr.vmem [resolvable:$true] %s15
      %18 = dma.hbm_to_vmem [thread:$0]  %s0, 128, %s16, [#allocation3]
    $region5: #{tpu_custom_call.1} parent=1 // pred_fallthru
      _
    // Predicated region
    $region6: #{tpu_custom_call.1} parent=1 // pred_check
      _
    $region7: #{tpu_custom_call.1} parent=1 // pred_check_branch
      %20 = sbr.rel (0) target = $region9
    $region8: #{tpu_custom_call.1} parent=1 // pred_region
      _
    $region9: #{tpu_custom_call.1} parent=1 // pred_fallthru
      _
    // Predicated region
    $region10: #{tpu_custom_call.1} parent=1 // pred_check
      _
    $region11: #{tpu_custom_call.1} parent=1 // pred_check_branch
      %22 = sbr.rel (0) target = $region13
    $region12: #{tpu_custom_call.1} parent=1 // pred_region
      _
    $region13: #{tpu_custom_call.1} parent=1 // pred_fallthru
      _
    // Predicated region
    $region14: #{tpu_custom_call.1} parent=1 // pred_check
      _
    $region15: #{tpu_custom_call.1} parent=1 // pred_check_branch
      %24 = sbr.rel (0) target = $region17
    $region16: #{tpu_custom_call.1} parent=1 // pred_region
      %25 = dma.done [#allocation3], 128
    $region17: #{tpu_custom_call.1} parent=1 // pred_fallthru
      _
    %v26 = vld [vmem:[#allocation2] sm:$0xff]
    %v27 = vld [vmem:[%s1] sm:$0x3]
    %v28 = vld [vmem:[%s2] sm:$0x1]
    %v30 = vlaneseq
    %v31 = vshrl.u32 %v30, 7
    %v32 = vsub.s32 0, %v31
    %v33 = vrot.slane %v28, %v32
    %vm35 = vcmask 80896
    %v37 = vsel %vm35, %v26, 0
    %v40 = vsel %vm35, %v27, 0
    %42 = vmatprep.subr.mxu0 0.0
    %43 = vmatpush1.xpose.msra.mxu0 %v40
    %44 = vmatprep.subr.mxu0 0.0
    %45 = vmatpush1.xpose.msra.mxu0 0.0
    %46 = vmatprep.subr.mxu0 0.0
    %47 = vmatpush1.xpose.msra.mxu0 0.0
    %48 = vmatprep.subr.mxu0 0.0
    %49 = vmatpush1.xpose.msra.mxu0 0.0
    %50 = vmatprep.subr.mxu0 0.0
    %51 = vmatpush1.xpose.msra.mxu0 0.0
    %52 = vmatprep.subr.mxu0 0.0
    %53 = vmatpush1.xpose.msra.mxu0 0.0
    %54 = vmatprep.subr.mxu0 0.0
    %55 = vmatpush1.xpose.msra.mxu0 0.0
    %56 = vmatprep.subr.mxu0 0.0
    %57 = vmatpush1.xpose.msra.mxu0 0.0
    %58 = vmatprep.subr.mxu0 0.0
    %59 = vmatpush1.xpose.msra.mxu0 0.0
    %60 = vmatprep.subr.mxu0 0.0
    %61 = vmatpush1.xpose.msra.mxu0 0.0
    %62 = vmatprep.subr.mxu0 0.0
    %63 = vmatpush1.xpose.msra.mxu0 0.0
    %64 = vmatprep.subr.mxu0 0.0
    %65 = vmatpush1.xpose.msra.mxu0 0.0
    %66 = vmatprep.subr.mxu0 0.0
    %67 = vmatpush1.xpose.msra.mxu0 0.0
    %68 = vmatprep.subr.mxu0 0.0
    %69 = vmatpush1.xpose.msra.mxu0 0.0
    %70 = vmatprep.subr.mxu0 0.0
    %71 = vmatpush1.xpose.msra.mxu0 0.0
    %72 = vmatprep.subr.mxu0 0.0
    %73 = vmatpush1.xpose.msra.mxu0 0.0
    %74 = vmatprep.subr.mxu0 0.0
    %75 = vmatpush1.xpose.msra.mxu0 0.0
    %76 = vmatprep.subr.mxu0 0.0
    %77 = vmatpush1.xpose.msra.mxu0 0.0
    %78 = vmatprep.subr.mxu0 0.0
    %79 = vmatpush1.xpose.msra.mxu0 0.0
    %80 = vmatprep.subr.mxu0 0.0
    %81 = vmatpush1.xpose.msra.mxu0 0.0
    %82 = vmatprep.subr.mxu0 0.0
    %83 = vmatpush1.xpose.msra.mxu0 0.0
    %84 = vmatprep.subr.mxu0 0.0
    %85 = vmatpush1.xpose.msra.mxu0 0.0
    %86 = vmatprep.subr.mxu0 0.0
    %87 = vmatpush1.xpose.msra.mxu0 0.0
    %88 = vmatprep.subr.mxu0 0.0
    %89 = vmatpush1.xpose.msra.mxu0 0.0
    %90 = vmatprep.subr.mxu0 0.0
    %91 = vmatpush1.xpose.msra.mxu0 0.0
    %92 = vmatprep.subr.mxu0 0.0
    %93 = vmatpush1.xpose.msra.mxu0 0.0
    %94 = vmatprep.subr.mxu0 0.0
    %95 = vmatpush1.xpose.msra.mxu0 0.0
    %96 = vmatprep.subr.mxu0 0.0
    %97 = vmatpush1.xpose.msra.mxu0 0.0
    %98 = vmatprep.subr.mxu0 0.0
    %99 = vmatpush1.xpose.msra.mxu0 0.0
    %100 = vmatprep.subr.mxu0 0.0
    %101 = vmatpush1.xpose.msra.mxu0 0.0
    %102 = vmatprep.subr.mxu0 0.0
    %103 = vmatpush1.xpose.msra.mxu0 0.0
    %104 = vmatprep.subr.mxu0 0.0
    %105 = vmatpush1.xpose.msra.mxu0 0.0
    %106 = vmatprep.mubr.f32.mxu0 0.0
    %107 = vmatmul.mubr.f32.gmra.mrb[0].mxu0 %v37
    %v108 = vpop.f32.mrb[0].mxu0
    %v109 = vadd.f32 %v33, %v108
    %v110 = vpop.f32.mrb[0].mxu0
    %111 = vdwg.mxu0
    %vm112 = vcmask 15360
    %113 = vst.msk [vmem:[%s3] sm:$0xff] %vm112, %v109
    // Predicated region
    $region18: #{tpu_custom_call.1} parent=1 // pred_check
      _
    $region19: #{tpu_custom_call.1} parent=1 // pred_check_branch
      %115 = sbr.rel (0) target = $region21
    $region20: #{tpu_custom_call.1} parent=1 // pred_region
      _
    $region21: #{tpu_custom_call.1} parent=1 // pred_fallthru
      _
    // Predicated region
    $region22: #{tpu_custom_call.1} parent=1 // pred_check
      _
    $region23: #{tpu_custom_call.1} parent=1 // pred_check_branch
      %117 = sbr.rel (0) target = $region25
    $region24: #{tpu_custom_call.1} parent=1 // pred_region
      _
    $region25: #{tpu_custom_call.1} parent=1 // pred_fallthru
      _
    %118 = vsyncpa [#allocation3], 1

</llo_original>
